<compile_context>
chip_gen: v5e
topology: v5e:2x2
jax: 0.10.0
libtpu: 0.0.40
codegen_flags: <defaults>
</compile_context>

<pallas_src>
import jax
import jax.numpy as jnp
from jax.experimental import pallas as pl
from jax.experimental.pallas import tpu as pltpu


def _round_up(n, m):
    return ((n + m - 1) // m) * m


def mlp_kernel(x_ref, w1_ref, b1_ref, w2_ref, b2_ref, w3_ref, b3_ref, o_ref):
    """One batch tile of the fused 3-layer MLP.

    x_ref : [TILE_B, D_in] f32    (batch on sublanes, features on lanes)
    w1_ref: [D_in, 128]    bf16   b1_ref: [1, 128] f32
    w2_ref: [128, 64]      bf16   b2_ref: [1, 64]  f32
    w3_ref: [1, 64]        f32    (row form of the (64,1) weight)
    b3_ref: [1, 1]         f32    scalar, lives in SMEM
    o_ref : [1, TILE_B]    f32    lane-dense output slab
    """
    # In-kernel VPU cast f32 -> bf16 (avoids a separate wrapper pass over x in HBM).
    x = x_ref[...].astype(jnp.bfloat16)

    # Layer 1: Linear(D_in, 128) + ReLU  (bf16 MXU, f32 accumulation)
    h1 = jnp.dot(x, w1_ref[...], preferred_element_type=jnp.float32) + b1_ref[...]
    h1 = jnp.maximum(h1, 0.0)

    # Dropout(0.3): identity in eval mode.
    # TODO(synk): training-mode dropout (random mask, scale by 1/0.7) not implemented.

    # Layer 2: Linear(128, 64) + ReLU
    h2 = jnp.dot(h1.astype(jnp.bfloat16), w2_ref[...],
                 preferred_element_type=jnp.float32) + b2_ref[...]
    h2 = jnp.maximum(h2, 0.0)

    # Layer 3: Linear(64, 1) as VPU multiply + cross-lane (XLU) reduce
    # (an N=1 MXU matmul would burn a full MXU pass per tile for one output lane).
    out_row = jnp.sum(h2 * w3_ref[...], axis=-1) + b3_ref[0, 0]   # [TILE_B] f32

    # Lane-dense store: batch lives on lanes of the output slab.
    o_ref[...] = out_row[None, :].astype(o_ref.dtype)


def _pick_tile_b(B, requested):
    """Batch tile: multiple of 256 (lane-dense output 128-aligned), large enough
    to amortize per-grid-step overhead, clamped for small B, and split into
    >=2 tiles when possible so v7x's two TensorCores both get work."""
    tile = max(256, _round_up(min(requested, max(B, 1)), 256))
    if B > 512:
        tile = min(tile, _round_up(pl.cdiv(B, 2), 256))
    return tile


def protein_prediction_forward(x, params, *, tile_b=8192):
    """x: [B, D_in] float32 -> [B, 1] float32 (eval-mode forward)."""
    w1, b1, w2, b2, w3, b3 = params
    B, D_in = x.shape
    H1 = w1.shape[1]          # 128
    H2 = w2.shape[1]          # 64

    tile_b = _pick_tile_b(B, tile_b)
    num_tiles = pl.cdiv(B, tile_b)
    b_out = num_tiles * tile_b        # output slab width (x itself is NOT padded)

    # Weights/biases are tiny; one-time casts here are negligible HBM traffic.
    w1_b = w1.astype(jnp.bfloat16)
    w2_b = w2.astype(jnp.bfloat16)
    w3_row = w3.reshape(1, H2).astype(jnp.float32)   # (64,1) -> (1,64)
    b1_f = b1.astype(jnp.float32)
    b2_f = b2.astype(jnp.float32)
    b3_s = b3.reshape(1, 1).astype(jnp.float32)      # scalar for SMEM

    flops = 2 * B * (D_in * H1 + H1 * H2 + H2)
    bytes_accessed = (B * D_in * 4 + B * 4
                      + (D_in * H1 + H1 * H2) * 2 + (H1 + H2 + H2 + 1) * 4)

    out2d = pl.pallas_call(
        mlp_kernel,
        out_shape=jax.ShapeDtypeStruct((1, b_out), jnp.float32),
        grid=(num_tiles,),
        in_specs=[
            pl.BlockSpec((tile_b, D_in), lambda i: (i, 0)),     # x tile (pipelined, f32)
            pl.BlockSpec((D_in, H1), lambda i: (0, 0)),         # w1 (resident)
            pl.BlockSpec((1, H1), lambda i: (0, 0)),            # b1
            pl.BlockSpec((H1, H2), lambda i: (0, 0)),           # w2
            pl.BlockSpec((1, H2), lambda i: (0, 0)),            # b2
            pl.BlockSpec((1, H2), lambda i: (0, 0)),            # w3 row
            pl.BlockSpec(memory_space=pltpu.MemorySpace.SMEM),  # b3 scalar
        ],
        out_specs=pl.BlockSpec((1, tile_b), lambda i: (0, i)),
        compiler_params=pltpu.CompilerParams(
            dimension_semantics=("parallel",),
            vmem_limit_bytes=40 * 1024 * 1024,
        ),
        cost_estimate=pl.CostEstimate(
            flops=flops, transcendentals=0, bytes_accessed=bytes_accessed),
    )(x, w1_b, b1_f, w2_b, b2_f, w3_row, b3_s)

    # Columns >= B come from ragged-block garbage rows; never consume them.
    return out2d[0, :B].reshape(B, 1)


def init_params(key, input_dim):
    """Deterministic init mimicking PyTorch nn.Linear default
    (U[-1/sqrt(fan_in), 1/sqrt(fan_in)]); weights stored as [in, out]."""
    def linear(k, fan_in, fan_out):
        kw, kb = jax.random.split(k)
        bound = 1.0 / jnp.sqrt(fan_in)
        w = jax.random.uniform(kw, (fan_in, fan_out), jnp.float32, -bound, bound)
        b = jax.random.uniform(kb, (1, fan_out), jnp.float32, -bound, bound)
        return w, b

    k1, k2, k3 = jax.random.split(key, 3)
    w1, b1 = linear(k1, input_dim, 128)
    w2, b2 = linear(k2, 128, 64)
    w3, b3 = linear(k3, 64, 1)
    return w1, b1, w2, b2, w3, b3


if __name__ == "__main__":
    key = jax.random.PRNGKey(0)
    kx, kp = jax.random.split(key)

    batch = 8
    input_dim = 32                      # X_train.shape[1] analogue (small synthetic)

    x = jax.random.normal(kx, (batch, input_dim), jnp.float32)
    params = init_params(kp, input_dim)

    out = protein_prediction_forward(x, params)
    out = jax.block_until_ready(out)

    # Reference in plain JAX, mirroring the kernel's dtype handling
    # (bf16 cast of x/weights before the matmuls, f32 accumulation), eval-mode.
    w1, b1, w2, b2, w3, b3 = params
    xf = x.astype(jnp.bfloat16).astype(jnp.float32)
    w1f = w1.astype(jnp.bfloat16).astype(jnp.float32)
    w2f = w2.astype(jnp.bfloat16).astype(jnp.float32)
    h1 = jnp.maximum(xf @ w1f + b1, 0.0).astype(jnp.bfloat16).astype(jnp.float32)
    h2 = jnp.maximum(h1 @ w2f + b2, 0.0)
    ref = h2 @ w3 + b3

    assert out.shape == (batch, 1)
    assert jnp.allclose(out, ref, atol=2e-2, rtol=2e-2)

    print("KERNEL_OK")
</pallas_src>

<mosaic_0001>
module attributes {stable_mosaic.version = 11 : i64} {
  func.func @mlp_kernel(%arg0: i32, %arg1: memref<256x32xf32, #tpu.memory_space<vmem>>, %arg2: memref<32x128xbf16, #tpu.memory_space<vmem>>, %arg3: memref<1x128xf32, #tpu.memory_space<vmem>>, %arg4: memref<128x64xbf16, #tpu.memory_space<vmem>>, %arg5: memref<1x64xf32, #tpu.memory_space<vmem>>, %arg6: memref<1x64xf32, #tpu.memory_space<vmem>>, %arg7: memref<1x1xf32, #tpu.memory_space<smem>>, %arg8: memref<1x256xf32, #tpu.memory_space<vmem>>) attributes {dimension_semantics = [#tpu.dimension_semantics<parallel>], iteration_bounds = array<i64: 1>, scalar_prefetch = 0 : i64, scratch_operands = 0 : i64, tpu.core_type = #tpu.core_type<tc>, window_params = [{transform_indices = @transform_0, window_bounds = array<i64: 256, 32>}, {pipeline_mode = #tpu.pipeline_mode<synchronous>, transform_indices = @transform_1, window_bounds = array<i64: 32, 128>}, {pipeline_mode = #tpu.pipeline_mode<synchronous>, transform_indices = @transform_2, window_bounds = array<i64: 1, 128>}, {pipeline_mode = #tpu.pipeline_mode<synchronous>, transform_indices = @transform_3, window_bounds = array<i64: 128, 64>}, {pipeline_mode = #tpu.pipeline_mode<synchronous>, transform_indices = @transform_4, window_bounds = array<i64: 1, 64>}, {pipeline_mode = #tpu.pipeline_mode<synchronous>, transform_indices = @transform_5, window_bounds = array<i64: 1, 64>}, {transform_indices = @transform_6, window_bounds = array<i64: 1, 1>}, {transform_indices = @transform_7, window_bounds = array<i64: 1, 256>}]} {
    %c0 = arith.constant 0 : index
    %c0_0 = arith.constant 0 : index
    %0 = vector.load %arg1[%c0, %c0_0] : memref<256x32xf32, #tpu.memory_space<vmem>>, vector<256x32xf32>
    %1 = arith.truncf %0 : vector<256x32xf32> to vector<256x32xbf16>
    %c0_1 = arith.constant 0 : index
    %c0_2 = arith.constant 0 : index
    %2 = vector.load %arg2[%c0_1, %c0_2] : memref<32x128xbf16, #tpu.memory_space<vmem>>, vector<32x128xbf16>
    %cst = arith.constant dense<0.000000e+00> : vector<256x128xf32>
    %3 = tpu.matmul %1, %2, %cst {dimension_numbers = #tpu.dot_dimension_numbers<[1], [0], [0], [1], [0, 0, 1, 1], [], []>} : vector<256x32xbf16>, vector<32x128xbf16>, vector<256x128xf32> -> vector<256x128xf32>
    %c0_3 = arith.constant 0 : index
    %c0_4 = arith.constant 0 : index
    %4 = vector.load %arg3[%c0_3, %c0_4] : memref<1x128xf32, #tpu.memory_space<vmem>>, vector<1x128xf32>
    %5 = vector.broadcast %4 : vector<1x128xf32> to vector<256x128xf32>
    %6 = arith.addf %3, %5 : vector<256x128xf32>
    %cst_5 = arith.constant 0.000000e+00 : f32
    %7 = vector.broadcast %cst_5 : f32 to vector<256x128xf32>
    %8 = arith.maximumf %6, %7 : vector<256x128xf32>
    %9 = arith.truncf %8 : vector<256x128xf32> to vector<256x128xbf16>
    %c0_6 = arith.constant 0 : index
    %c0_7 = arith.constant 0 : index
    %10 = vector.load %arg4[%c0_6, %c0_7] : memref<128x64xbf16, #tpu.memory_space<vmem>>, vector<128x64xbf16>
    %cst_8 = arith.constant dense<0.000000e+00> : vector<256x64xf32>
    %11 = tpu.matmul %9, %10, %cst_8 {dimension_numbers = #tpu.dot_dimension_numbers<[1], [0], [0], [1], [0, 0, 1, 1], [], []>} : vector<256x128xbf16>, vector<128x64xbf16>, vector<256x64xf32> -> vector<256x64xf32>
    %c0_9 = arith.constant 0 : index
    %c0_10 = arith.constant 0 : index
    %12 = vector.load %arg5[%c0_9, %c0_10] : memref<1x64xf32, #tpu.memory_space<vmem>>, vector<1x64xf32>
    %13 = vector.broadcast %12 : vector<1x64xf32> to vector<256x64xf32>
    %14 = arith.addf %11, %13 : vector<256x64xf32>
    %cst_11 = arith.constant 0.000000e+00 : f32
    %15 = vector.broadcast %cst_11 : f32 to vector<256x64xf32>
    %16 = arith.maximumf %14, %15 : vector<256x64xf32>
    %c0_12 = arith.constant 0 : index
    %c0_13 = arith.constant 0 : index
    %17 = vector.load %arg6[%c0_12, %c0_13] : memref<1x64xf32, #tpu.memory_space<vmem>>, vector<1x64xf32>
    %18 = vector.broadcast %17 : vector<1x64xf32> to vector<256x64xf32>
    %19 = arith.mulf %16, %18 : vector<256x64xf32>
    %cst_14 = arith.constant dense<0.000000e+00> : vector<256xf32>
    %20 = vector.multi_reduction <add>, %19, %cst_14 [1] : vector<256x64xf32> to vector<256xf32>
    %c0_15 = arith.constant 0 : index
    %c0_16 = arith.constant 0 : index
    %21 = memref.load %arg7[%c0_15, %c0_16] : memref<1x1xf32, #tpu.memory_space<smem>>
    %22 = vector.broadcast %21 : f32 to vector<256xf32>
    %23 = arith.addf %20, %22 : vector<256xf32>
    %24 = vector.shape_cast %23 : vector<256xf32> to vector<1x256xf32>
    %c0_17 = arith.constant 0 : index
    %c0_18 = arith.constant 0 : index
    %25 = vector.load %arg8[%c0_17, %c0_18] : memref<1x256xf32, #tpu.memory_space<vmem>>, vector<1x256xf32>
    tpu.vector_store %arg8[%c0_17, %c0_18], %24 {strides = array<i32>} : memref<1x256xf32, #tpu.memory_space<vmem>>, vector<1x256xf32>,
    return
  }
  func.func @transform_0(%arg0: i32) -> (i32, i32) {
    %c0_i32 = arith.constant 0 : i32
    %c0_i32_0 = arith.constant 0 : i32
    return %arg0, %c0_i32 : i32, i32
  }
  func.func @transform_1(%arg0: i32) -> (i32, i32) {
    %c0_i32 = arith.constant 0 : i32
    %c0_i32_0 = arith.constant 0 : i32
    %c0_i32_1 = arith.constant 0 : i32
    return %c0_i32, %c0_i32_0 : i32, i32
  }
  func.func @transform_2(%arg0: i32) -> (i32, i32) {
    %c0_i32 = arith.constant 0 : i32
    %c0_i32_0 = arith.constant 0 : i32
    %c0_i32_1 = arith.constant 0 : i32
    return %c0_i32, %c0_i32_0 : i32, i32
  }
  func.func @transform_3(%arg0: i32) -> (i32, i32) {
    %c0_i32 = arith.constant 0 : i32
    %c0_i32_0 = arith.constant 0 : i32
    %c0_i32_1 = arith.constant 0 : i32
    return %c0_i32, %c0_i32_0 : i32, i32
  }
  func.func @transform_4(%arg0: i32) -> (i32, i32) {
    %c0_i32 = arith.constant 0 : i32
    %c0_i32_0 = arith.constant 0 : i32
    %c0_i32_1 = arith.constant 0 : i32
    return %c0_i32, %c0_i32_0 : i32, i32
  }
  func.func @transform_5(%arg0: i32) -> (i32, i32) {
    %c0_i32 = arith.constant 0 : i32
    %c0_i32_0 = arith.constant 0 : i32
    %c0_i32_1 = arith.constant 0 : i32
    return %c0_i32, %c0_i32_0 : i32, i32
  }
  func.func @transform_6(%arg0: i32) -> (i32, i32) {
    %c0_i32 = arith.constant 0 : i32
    %c0_i32_0 = arith.constant 0 : i32
    %c0_i32_1 = arith.constant 0 : i32
    return %c0_i32, %c0_i32_0 : i32, i32
  }
  func.func @transform_7(%arg0: i32) -> (i32, i32) {
    %c0_i32 = arith.constant 0 : i32
    %c0_i32_0 = arith.constant 0 : i32
    return %c0_i32, %arg0 : i32, i32
  }
}

</mosaic_0001>

<llo_original>
// kernel: tpu_custom_call.1
$region0: #{tpu_custom_call.1}
  #allocation0 [shape = 'u32[]', space=smem, size = 0x4, offset = 0x4, fixed_abs, tag = 'smem constant byte address 0x4 - core index']
  #allocation1 [shape = 'u32[72,128]{1,0:T(1,128)}', space=vmem, size = 0x9000, scoped, tag = 'internal scratch']
  #allocation2 [shape = 'f32[1,1]{1,0:T(1,128)S(6)}', space=smem, size = 0x200, scoped, tag = 'scoped memory for tpu_custom_call.1']
  %s0 = inlined_call_operand.vmem [shape: f32[8,32], index: 0, kind: input, shape index: {}]
  %s1 = inlined_call_operand.vmem [shape: bf16[32,128], index: 1, kind: input, shape index: {}]
  %s2 = inlined_call_operand.vmem [shape: f32[1,128], index: 2, kind: input, shape index: {}]
  %s3 = inlined_call_operand.vmem [shape: bf16[128,64], index: 3, kind: input, shape index: {}]
  %s4 = inlined_call_operand.vmem [shape: f32[1,64], index: 4, kind: input, shape index: {}]
  %s5 = inlined_call_operand.vmem [shape: f32[1,64], index: 5, kind: input, shape index: {}]
  %s6 = inlined_call_operand.<no memory space> [shape: f32[1,1], index: 6, kind: input, shape index: {}]
  %s7 = inlined_call_operand.hbm [shape: f32[1,256], index: 7, kind: output, shape index: {}]
  %s8 = sld [smem:[#allocation0]]
  $region38: #{tpu_custom_call.1} parent=0
    _
  %s10 = ssub.s32 1, %s8
  %s11 = scalar_select 0, %s10, %s8
  %12 = sst [smem:[#allocation2]] %s6
  $region1: #{tpu_custom_call.1} parent=0
    #allocation3 [shape = 'u8[1024]{0}', space=vmem, size = 0x400, scoped, tag = 'output window, operand 0, single buffered']
    #allocation4 [shape = 's32[1]{0}', space=sflag, size = 0x4, scoped, tag = 'scoped memory for tpu_custom_call.1']
    %13 = vsyncpa [#allocation4], 0
    // Predicated region
    $region2: #{tpu_custom_call.1} parent=1 // pred_check
      _
    $region3: #{tpu_custom_call.1} parent=1 // pred_check_branch
      %15 = sbr.rel (0) target = $region5
    $region4: #{tpu_custom_call.1} parent=1 // pred_region
      _
    $region5: #{tpu_custom_call.1} parent=1 // pred_fallthru
      _
    // Predicated region
    $region6: #{tpu_custom_call.1} parent=1 // pred_check
      _
    $region7: #{tpu_custom_call.1} parent=1 // pred_check_branch
      %17 = sbr.rel (0) target = $region9
    $region8: #{tpu_custom_call.1} parent=1 // pred_region
      _
    $region9: #{tpu_custom_call.1} parent=1 // pred_fallthru
      _
    // Predicated region
    $region10: #{tpu_custom_call.1} parent=1 // pred_check
      _
    $region11: #{tpu_custom_call.1} parent=1 // pred_check_branch
      %19 = sbr.rel (0) target = $region13
    $region12: #{tpu_custom_call.1} parent=1 // pred_region
      _
    $region13: #{tpu_custom_call.1} parent=1 // pred_fallthru
      _
    // Predicated region
    $region14: #{tpu_custom_call.1} parent=1 // pred_check
      _
    $region15: #{tpu_custom_call.1} parent=1 // pred_check_branch
      %21 = sbr.rel (0) target = $region17
    $region16: #{tpu_custom_call.1} parent=1 // pred_region
      _
    $region17: #{tpu_custom_call.1} parent=1 // pred_fallthru
      _
    // Predicated region
    $region18: #{tpu_custom_call.1} parent=1 // pred_check
      _
    $region19: #{tpu_custom_call.1} parent=1 // pred_check_branch
      %23 = sbr.rel (0) target = $region21
    $region20: #{tpu_custom_call.1} parent=1 // pred_region
      _
    $region21: #{tpu_custom_call.1} parent=1 // pred_fallthru
      _
    // Predicated region
    $region22: #{tpu_custom_call.1} parent=1 // pred_check
      _
    $region23: #{tpu_custom_call.1} parent=1 // pred_check_branch
      %25 = sbr.rel (0) target = $region25
    $region24: #{tpu_custom_call.1} parent=1 // pred_region
      _
    $region25: #{tpu_custom_call.1} parent=1 // pred_fallthru
      _
    // Predicated region
    $region26: #{tpu_custom_call.1} parent=1 // pred_check
      _
    $region27: #{tpu_custom_call.1} parent=1 // pred_check_branch
      %27 = sbr.rel (0) target = $region29
    $region28: #{tpu_custom_call.1} parent=1 // pred_region
      _
    $region29: #{tpu_custom_call.1} parent=1 // pred_fallthru
      _
    %v29 = vld [vmem:[%s0] sm:$0xff]
    %v30 = vld [vmem:[%s0 + $0x8] sm:$0xff]
    %v31 = vld [vmem:[%s0 + $0x10] sm:$0xff]
    %v32 = vld [vmem:[%s0 + $0x18] sm:$0xff]
    %v33 = vld [vmem:[%s0 + $0x20] sm:$0xff]
    %v34 = vld [vmem:[%s0 + $0x28] sm:$0xff]
    %v35 = vld [vmem:[%s0 + $0x30] sm:$0xff]
    %v36 = vld [vmem:[%s0 + $0x38] sm:$0xff]
    %v37 = vld [vmem:[%s0 + $0x40] sm:$0xff]
    %v38 = vld [vmem:[%s0 + $0x48] sm:$0xff]
    %v39 = vld [vmem:[%s0 + $0x50] sm:$0xff]
    %v40 = vld [vmem:[%s0 + $0x58] sm:$0xff]
    %v41 = vld [vmem:[%s0 + $0x60] sm:$0xff]
    %v42 = vld [vmem:[%s0 + $0x68] sm:$0xff]
    %v43 = vld [vmem:[%s0 + $0x70] sm:$0xff]
    %v44 = vld [vmem:[%s0 + $0x78] sm:$0xff]
    %v45 = vld [vmem:[%s0 + $0x80] sm:$0xff]
    %v46 = vld [vmem:[%s0 + $0x88] sm:$0xff]
    %v47 = vld [vmem:[%s0 + $0x90] sm:$0xff]
    %v48 = vld [vmem:[%s0 + $0x98] sm:$0xff]
    %v49 = vld [vmem:[%s0 + $0xa0] sm:$0xff]
    %v50 = vld [vmem:[%s0 + $0xa8] sm:$0xff]
    %v51 = vld [vmem:[%s0 + $0xb0] sm:$0xff]
    %v52 = vld [vmem:[%s0 + $0xb8] sm:$0xff]
    %v53 = vld [vmem:[%s0 + $0xc0] sm:$0xff]
    %v54 = vld [vmem:[%s0 + $0xc8] sm:$0xff]
    %v55 = vld [vmem:[%s0 + $0xd0] sm:$0xff]
    %v56 = vld [vmem:[%s0 + $0xd8] sm:$0xff]
    %v57 = vld [vmem:[%s0 + $0xe0] sm:$0xff]
    %v58 = vld [vmem:[%s0 + $0xe8] sm:$0xff]
    %v59 = vld [vmem:[%s0 + $0xf0] sm:$0xff]
    %v60 = vld [vmem:[%s0 + $0xf8] sm:$0xff]
    %v61 = vpack.c.bf16 %v30, %v29
    %v62 = vpack.c.bf16 %v32, %v31
    %v63 = vpack.c.bf16 %v34, %v33
    %v64 = vpack.c.bf16 %v36, %v35
    %v65 = vpack.c.bf16 %v38, %v37
    %v66 = vpack.c.bf16 %v40, %v39
    %v67 = vpack.c.bf16 %v42, %v41
    %v68 = vpack.c.bf16 %v44, %v43
    %v69 = vpack.c.bf16 %v46, %v45
    %v70 = vpack.c.bf16 %v48, %v47
    %v71 = vpack.c.bf16 %v50, %v49
    %v72 = vpack.c.bf16 %v52, %v51
    %v73 = vpack.c.bf16 %v54, %v53
    %v74 = vpack.c.bf16 %v56, %v55
    %v75 = vpack.c.bf16 %v58, %v57
    %v76 = vpack.c.bf16 %v60, %v59
    %v77 = vld [vmem:[%s1] sm:$0xf]
    %v78 = vld [vmem:[%s1 + $0x4] sm:$0xf]
    %v79 = vld [vmem:[%s1 + $0x8] sm:$0xf]
    %v80 = vld [vmem:[%s1 + $0xc] sm:$0xf]
    %v81 = vld [vmem:[%s2] sm:$0x1]
    %v83 = vperm.slane %v81, 0
    %v89 = vunpack.c.l.b16 %v77
    %v90 = vunpack.c.l.b16 %v78
    %v91 = vunpack.c.l.b16 %v79
    %v92 = vunpack.c.l.b16 %v80
    %v93 = vpack.c.b16 %v90, %v89
    %v94 = vpack.c.b16 %v92, %v91
    %vm97 = vcmask 261120
    %v99 = vsel %vm97, %v61, 0
    %v102 = vsel %vm97, %v62, 0
    %v105 = vsel %vm97, %v63, 0
    %v108 = vsel %vm97, %v64, 0
    %v111 = vsel %vm97, %v65, 0
    %v114 = vsel %vm97, %v66, 0
    %v117 = vsel %vm97, %v67, 0
    %v120 = vsel %vm97, %v68, 0
    %v123 = vsel %vm97, %v69, 0
    %v126 = vsel %vm97, %v70, 0
    %v129 = vsel %vm97, %v71, 0
    %v132 = vsel %vm97, %v72, 0
    %v135 = vsel %vm97, %v73, 0
    %v138 = vsel %vm97, %v74, 0
    %v141 = vsel %vm97, %v75, 0
    %v144 = vsel %vm97, %v76, 0
    %146 = vmatpush.bf16.msra.mxu0 0
    %147 = vmatpush.bf16.msra.mxu0 0
    %148 = vmatpush.bf16.msra.mxu0 0
    %149 = vmatpush.bf16.msra.mxu0 0
    %150 = vmatpush.bf16.msra.mxu0 0
    %151 = vmatpush.bf16.msra.mxu0 0
    %152 = vmatpush.bf16.msra.mxu0 %v94
    %153 = vmatpush.bf16.msra.mxu0 %v93
    %154 = vmatmul.bf16.gmra.mxu0 %v99
    %v155 = vpop.f32.mrf.mxu0
    %v156 = vadd.f32 %v83, %v155
    %v157 = vpop.f32.mrf.mxu0
    %v158 = vadd.f32 %v83, %v157
    %159 = vmatmul.bf16.gmra.mxu0 %v102
    %v160 = vpop.f32.mrf.mxu0
    %v161 = vadd.f32 %v83, %v160
    %v162 = vpop.f32.mrf.mxu0
    %v163 = vadd.f32 %v83, %v162
    %164 = vmatmul.bf16.gmra.mxu0 %v105
    %v165 = vpop.f32.mrf.mxu0
    %v166 = vadd.f32 %v83, %v165
    %v167 = vpop.f32.mrf.mxu0
    %v168 = vadd.f32 %v83, %v167
    %169 = vmatmul.bf16.gmra.mxu0 %v108
    %v170 = vpop.f32.mrf.mxu0
    %v171 = vadd.f32 %v83, %v170
    %v172 = vpop.f32.mrf.mxu0
    %v173 = vadd.f32 %v83, %v172
    %174 = vmatmul.bf16.gmra.mxu0 %v111
    %v175 = vpop.f32.mrf.mxu0
    %v176 = vadd.f32 %v83, %v175
    %v177 = vpop.f32.mrf.mxu0
    %v178 = vadd.f32 %v83, %v177
    %179 = vmatmul.bf16.gmra.mxu0 %v114
    %v180 = vpop.f32.mrf.mxu0
    %v181 = vadd.f32 %v83, %v180
    %v182 = vpop.f32.mrf.mxu0
    %v183 = vadd.f32 %v83, %v182
    %184 = vmatmul.bf16.gmra.mxu0 %v117
    %v185 = vpop.f32.mrf.mxu0
    %v186 = vadd.f32 %v83, %v185
    %v187 = vpop.f32.mrf.mxu0
    %v188 = vadd.f32 %v83, %v187
    %189 = vmatmul.bf16.gmra.mxu0 %v120
    %v190 = vpop.f32.mrf.mxu0
    %v191 = vadd.f32 %v83, %v190
    %v192 = vpop.f32.mrf.mxu0
    %v193 = vadd.f32 %v83, %v192
    %194 = vmatmul.bf16.gmra.mxu0 %v123
    %v195 = vpop.f32.mrf.mxu0
    %v196 = vadd.f32 %v83, %v195
    %v197 = vpop.f32.mrf.mxu0
    %v198 = vadd.f32 %v83, %v197
    %199 = vmatmul.bf16.gmra.mxu0 %v126
    %v200 = vpop.f32.mrf.mxu0
    %v201 = vadd.f32 %v83, %v200
    %v202 = vpop.f32.mrf.mxu0
    %v203 = vadd.f32 %v83, %v202
    %204 = vmatmul.bf16.gmra.mxu0 %v129
    %v205 = vpop.f32.mrf.mxu0
    %v206 = vadd.f32 %v83, %v205
    %v207 = vpop.f32.mrf.mxu0
    %v208 = vadd.f32 %v83, %v207
    %209 = vmatmul.bf16.gmra.mxu0 %v132
    %v210 = vpop.f32.mrf.mxu0
    %v211 = vadd.f32 %v83, %v210
    %v212 = vpop.f32.mrf.mxu0
    %v213 = vadd.f32 %v83, %v212
    %214 = vmatmul.bf16.gmra.mxu0 %v135
    %v215 = vpop.f32.mrf.mxu0
    %v216 = vadd.f32 %v83, %v215
    %v217 = vpop.f32.mrf.mxu0
    %v218 = vadd.f32 %v83, %v217
    %219 = vmatmul.bf16.gmra.mxu0 %v138
    %v220 = vpop.f32.mrf.mxu0
    %v221 = vadd.f32 %v83, %v220
    %v222 = vpop.f32.mrf.mxu0
    %v223 = vadd.f32 %v83, %v222
    %224 = vmatmul.bf16.gmra.mxu0 %v141
    %v225 = vpop.f32.mrf.mxu0
    %v226 = vadd.f32 %v83, %v225
    %v227 = vpop.f32.mrf.mxu0
    %v228 = vadd.f32 %v83, %v227
    %229 = vmatmul.bf16.gmra.mxu0 %v144
    %v230 = vpop.f32.mrf.mxu0
    %v231 = vadd.f32 %v83, %v230
    %v232 = vpop.f32.mrf.mxu0
    %v233 = vadd.f32 %v83, %v232
    %234 = vdwg.mxu0
    %v235 = vmax.f32 %v156, 0.0
    %v236 = vmax.f32 %v158, 0.0
    %v237 = vmax.f32 %v161, 0.0
    %v238 = vmax.f32 %v163, 0.0
    %v239 = vmax.f32 %v166, 0.0
    %v240 = vmax.f32 %v168, 0.0
    %v241 = vmax.f32 %v171, 0.0
    %v242 = vmax.f32 %v173, 0.0
    %v243 = vmax.f32 %v176, 0.0
    %v244 = vmax.f32 %v178, 0.0
    %v245 = vmax.f32 %v181, 0.0
    %v246 = vmax.f32 %v183, 0.0
    %v247 = vmax.f32 %v186, 0.0
    %v248 = vmax.f32 %v188, 0.0
    %v249 = vmax.f32 %v191, 0.0
    %v250 = vmax.f32 %v193, 0.0
    %v251 = vmax.f32 %v196, 0.0
    %v252 = vmax.f32 %v198, 0.0
    %v253 = vmax.f32 %v201, 0.0
    %v254 = vmax.f32 %v203, 0.0
    %v255 = vmax.f32 %v206, 0.0
    %v256 = vmax.f32 %v208, 0.0
    %v257 = vmax.f32 %v211, 0.0
    %v258 = vmax.f32 %v213, 0.0
    %v259 = vmax.f32 %v216, 0.0
    %v260 = vmax.f32 %v218, 0.0
    %v261 = vmax.f32 %v221, 0.0
    %v262 = vmax.f32 %v223, 0.0
    %v263 = vmax.f32 %v226, 0.0
    %v264 = vmax.f32 %v228, 0.0
    %v265 = vmax.f32 %v231, 0.0
    %v266 = vmax.f32 %v233, 0.0
    %v267 = vpack.c.bf16 %v236, %v235
    %v268 = vpack.c.bf16 %v238, %v237
    %v269 = vpack.c.bf16 %v240, %v239
    %v270 = vpack.c.bf16 %v242, %v241
    %v271 = vpack.c.bf16 %v244, %v243
    %v272 = vpack.c.bf16 %v246, %v245
    %v273 = vpack.c.bf16 %v248, %v247
    %v274 = vpack.c.bf16 %v250, %v249
    %v275 = vpack.c.bf16 %v252, %v251
    %v276 = vpack.c.bf16 %v254, %v253
    %v277 = vpack.c.bf16 %v256, %v255
    %v278 = vpack.c.bf16 %v258, %v257
    %v279 = vpack.c.bf16 %v260, %v259
    %v280 = vpack.c.bf16 %v262, %v261
    %v281 = vpack.c.bf16 %v264, %v263
    %v282 = vpack.c.bf16 %v266, %v265
    %v283 = vld [vmem:[%s3] sm:$0xf]
    %v284 = vld [vmem:[%s3 + $0x4] sm:$0xf]
    %v285 = vld [vmem:[%s3 + $0x8] sm:$0xf]
    %v286 = vld [vmem:[%s3 + $0xc] sm:$0xf]
    %v287 = vld [vmem:[%s3 + $0x10] sm:$0xf]
    %v288 = vld [vmem:[%s3 + $0x14] sm:$0xf]
    %v289 = vld [vmem:[%s3 + $0x18] sm:$0xf]
    %v290 = vld [vmem:[%s3 + $0x1c] sm:$0xf]
    %v291 = vld [vmem:[%s3 + $0x20] sm:$0xf]
    %v292 = vld [vmem:[%s3 + $0x24] sm:$0xf]
    %v293 = vld [vmem:[%s3 + $0x28] sm:$0xf]
    %v294 = vld [vmem:[%s3 + $0x2c] sm:$0xf]
    %v295 = vld [vmem:[%s3 + $0x30] sm:$0xf]
    %v296 = vld [vmem:[%s3 + $0x34] sm:$0xf]
    %v297 = vld [vmem:[%s3 + $0x38] sm:$0xf]
    %v298 = vld [vmem:[%s3 + $0x3c] sm:$0xf]
    %v299 = vld [vmem:[%s4] sm:$0x1]
    %v301 = vperm.slane %v299, 0
    %v319 = vunpack.c.l.b16 %v283
    %v320 = vunpack.c.l.b16 %v284
    %v321 = vunpack.c.l.b16 %v285
    %v322 = vunpack.c.l.b16 %v286
    %v323 = vunpack.c.l.b16 %v287
    %v324 = vunpack.c.l.b16 %v288
    %v325 = vunpack.c.l.b16 %v289
    %v326 = vunpack.c.l.b16 %v290
    %v327 = vunpack.c.l.b16 %v291
    %v328 = vunpack.c.l.b16 %v292
    %v329 = vunpack.c.l.b16 %v293
    %v330 = vunpack.c.l.b16 %v294
    %v331 = vunpack.c.l.b16 %v295
    %v332 = vunpack.c.l.b16 %v296
    %v333 = vunpack.c.l.b16 %v297
    %v334 = vunpack.c.l.b16 %v298
    %v335 = vpack.c.b16 %v320, %v319
    %v336 = vpack.c.b16 %v322, %v321
    %v337 = vpack.c.b16 %v324, %v323
    %v338 = vpack.c.b16 %v326, %v325
    %v339 = vpack.c.b16 %v328, %v327
    %v340 = vpack.c.b16 %v330, %v329
    %v341 = vpack.c.b16 %v332, %v331
    %v342 = vpack.c.b16 %v334, %v333
    %351 = vmatpush.bf16.msra.mxu0 %v342
    %352 = vmatpush.bf16.msra.mxu0 %v341
    %353 = vmatpush.bf16.msra.mxu0 %v340
    %354 = vmatpush.bf16.msra.mxu0 %v339
    %355 = vmatpush.bf16.msra.mxu0 %v338
    %356 = vmatpush.bf16.msra.mxu0 %v337
    %357 = vmatpush.bf16.msra.mxu0 %v336
    %358 = vmatpush.bf16.msra.mxu0 %v335
    %359 = vmatmul.bf16.gmra.mxu0 %v267
    %v360 = vpop.f32.mrf.mxu0
    %v361 = vadd.f32 %v301, %v360
    %v362 = vpop.f32.mrf.mxu0
    %v363 = vadd.f32 %v301, %v362
    %364 = vmatmul.bf16.gmra.mxu0 %v268
    %v365 = vpop.f32.mrf.mxu0
    %v366 = vadd.f32 %v301, %v365
    %v367 = vpop.f32.mrf.mxu0
    %v368 = vadd.f32 %v301, %v367
    %369 = vmatmul.bf16.gmra.mxu0 %v269
    %v370 = vpop.f32.mrf.mxu0
    %v371 = vadd.f32 %v301, %v370
    %v372 = vpop.f32.mrf.mxu0
    %v373 = vadd.f32 %v301, %v372
    %374 = vmatmul.bf16.gmra.mxu0 %v270
    %v375 = vpop.f32.mrf.mxu0
    %v376 = vadd.f32 %v301, %v375
    %v377 = vpop.f32.mrf.mxu0
    %v378 = vadd.f32 %v301, %v377
    %379 = vmatmul.bf16.gmra.mxu0 %v271
    %v380 = vpop.f32.mrf.mxu0
    %v381 = vadd.f32 %v301, %v380
    %v382 = vpop.f32.mrf.mxu0
    %v383 = vadd.f32 %v301, %v382
    %384 = vmatmul.bf16.gmra.mxu0 %v272
    %v385 = vpop.f32.mrf.mxu0
    %v386 = vadd.f32 %v301, %v385
    %v387 = vpop.f32.mrf.mxu0
    %v388 = vadd.f32 %v301, %v387
    %389 = vmatmul.bf16.gmra.mxu0 %v273
    %v390 = vpop.f32.mrf.mxu0
    %v391 = vadd.f32 %v301, %v390
    %v392 = vpop.f32.mrf.mxu0
    %v393 = vadd.f32 %v301, %v392
    %394 = vmatmul.bf16.gmra.mxu0 %v274
    %v395 = vpop.f32.mrf.mxu0
    %v396 = vadd.f32 %v301, %v395
    %v397 = vpop.f32.mrf.mxu0
    %v398 = vadd.f32 %v301, %v397
    %399 = vmatmul.bf16.gmra.mxu0 %v275
    %v400 = vpop.f32.mrf.mxu0
    %v401 = vadd.f32 %v301, %v400
    %v402 = vpop.f32.mrf.mxu0
    %v403 = vadd.f32 %v301, %v402
    %404 = vmatmul.bf16.gmra.mxu0 %v276
    %v405 = vpop.f32.mrf.mxu0
    %v406 = vadd.f32 %v301, %v405
    %v407 = vpop.f32.mrf.mxu0
    %v408 = vadd.f32 %v301, %v407
    %409 = vmatmul.bf16.gmra.mxu0 %v277
    %v410 = vpop.f32.mrf.mxu0
    %v411 = vadd.f32 %v301, %v410
    %v412 = vpop.f32.mrf.mxu0
    %v413 = vadd.f32 %v301, %v412
    %414 = vmatmul.bf16.gmra.mxu0 %v278
    %v415 = vpop.f32.mrf.mxu0
    %v416 = vadd.f32 %v301, %v415
    %v417 = vpop.f32.mrf.mxu0
    %v418 = vadd.f32 %v301, %v417
    %419 = vmatmul.bf16.gmra.mxu0 %v279
    %v420 = vpop.f32.mrf.mxu0
    %v421 = vadd.f32 %v301, %v420
    %v422 = vpop.f32.mrf.mxu0
    %v423 = vadd.f32 %v301, %v422
    %424 = vmatmul.bf16.gmra.mxu0 %v280
    %v425 = vpop.f32.mrf.mxu0
    %v426 = vadd.f32 %v301, %v425
    %v427 = vpop.f32.mrf.mxu0
    %v428 = vadd.f32 %v301, %v427
    %429 = vmatmul.bf16.gmra.mxu0 %v281
    %v430 = vpop.f32.mrf.mxu0
    %v431 = vadd.f32 %v301, %v430
    %v432 = vpop.f32.mrf.mxu0
    %v433 = vadd.f32 %v301, %v432
    %434 = vmatmul.bf16.gmra.mxu0 %v282
    %v435 = vpop.f32.mrf.mxu0
    %v436 = vadd.f32 %v301, %v435
    %v437 = vpop.f32.mrf.mxu0
    %v438 = vadd.f32 %v301, %v437
    %439 = vdwg.mxu0
    %v440 = vmax.f32 %v361, 0.0
    %v441 = vmax.f32 %v363, 0.0
    %v442 = vmax.f32 %v366, 0.0
    %v443 = vmax.f32 %v368, 0.0
    %v444 = vmax.f32 %v371, 0.0
    %v445 = vmax.f32 %v373, 0.0
    %v446 = vmax.f32 %v376, 0.0
    %v447 = vmax.f32 %v378, 0.0
    %v448 = vmax.f32 %v381, 0.0
    %v449 = vmax.f32 %v383, 0.0
    %v450 = vmax.f32 %v386, 0.0
    %v451 = vmax.f32 %v388, 0.0
    %v452 = vmax.f32 %v391, 0.0
    %v453 = vmax.f32 %v393, 0.0
    %v454 = vmax.f32 %v396, 0.0
    %v455 = vmax.f32 %v398, 0.0
    %v456 = vmax.f32 %v401, 0.0
    %v457 = vmax.f32 %v403, 0.0
    %v458 = vmax.f32 %v406, 0.0
    %v459 = vmax.f32 %v408, 0.0
    %v460 = vmax.f32 %v411, 0.0
    %v461 = vmax.f32 %v413, 0.0
    %v462 = vmax.f32 %v416, 0.0
    %v463 = vmax.f32 %v418, 0.0
    %v464 = vmax.f32 %v421, 0.0
    %v465 = vmax.f32 %v423, 0.0
    %v466 = vmax.f32 %v426, 0.0
    %v467 = vmax.f32 %v428, 0.0
    %v468 = vmax.f32 %v431, 0.0
    %v469 = vmax.f32 %v433, 0.0
    %v470 = vmax.f32 %v436, 0.0
    %v471 = vmax.f32 %v438, 0.0
    %v472 = vld [vmem:[%s5] sm:$0x1]
    %v474 = vperm.slane %v472, 0
    %v476 = vmul.f32 %v440, %v474
    %v477 = vmul.f32 %v441, %v474
    %v478 = vmul.f32 %v442, %v474
    %v479 = vmul.f32 %v443, %v474
    %v480 = vmul.f32 %v444, %v474
    %v481 = vmul.f32 %v445, %v474
    %v482 = vmul.f32 %v446, %v474
    %v483 = vmul.f32 %v447, %v474
    %v484 = vmul.f32 %v448, %v474
    %v485 = vmul.f32 %v449, %v474
    %v486 = vmul.f32 %v450, %v474
    %v487 = vmul.f32 %v451, %v474
    %v488 = vmul.f32 %v452, %v474
    %v489 = vmul.f32 %v453, %v474
    %v490 = vmul.f32 %v454, %v474
    %v491 = vmul.f32 %v455, %v474
    %v492 = vmul.f32 %v456, %v474
    %v493 = vmul.f32 %v457, %v474
    %v494 = vmul.f32 %v458, %v474
    %v495 = vmul.f32 %v459, %v474
    %v496 = vmul.f32 %v460, %v474
    %v497 = vmul.f32 %v461, %v474
    %v498 = vmul.f32 %v462, %v474
    %v499 = vmul.f32 %v463, %v474
    %v500 = vmul.f32 %v464, %v474
    %v501 = vmul.f32 %v465, %v474
    %v502 = vmul.f32 %v466, %v474
    %v503 = vmul.f32 %v467, %v474
    %v504 = vmul.f32 %v468, %v474
    %v505 = vmul.f32 %v469, %v474
    %v506 = vmul.f32 %v470, %v474
    %v507 = vmul.f32 %v471, %v474
    %vm508 = vcmask 523264
    %v509 = vsel %vm508, %v476, 0.0
    %510 = vadd.xlane.f32.xlu0 %v509
    %v511 = vpop.xlane.xlu0 %510
    %v512 = vsel %vm508, %v477, 0.0
    %513 = vadd.xlane.f32.xlu0 %v512
    %v514 = vpop.xlane.xlu0 %513
    %v515 = vsel %vm508, %v478, 0.0
    %516 = vadd.xlane.f32.xlu0 %v515
    %v517 = vpop.xlane.xlu0 %516
    %v518 = vsel %vm508, %v479, 0.0
    %519 = vadd.xlane.f32.xlu0 %v518
    %v520 = vpop.xlane.xlu0 %519
    %v521 = vsel %vm508, %v480, 0.0
    %522 = vadd.xlane.f32.xlu0 %v521
    %v523 = vpop.xlane.xlu0 %522
    %v524 = vsel %vm508, %v481, 0.0
    %525 = vadd.xlane.f32.xlu0 %v524
    %v526 = vpop.xlane.xlu0 %525
    %v527 = vsel %vm508, %v482, 0.0
    %528 = vadd.xlane.f32.xlu0 %v527
    %v529 = vpop.xlane.xlu0 %528
    %v530 = vsel %vm508, %v483, 0.0
    %531 = vadd.xlane.f32.xlu0 %v530
    %v532 = vpop.xlane.xlu0 %531
    %v533 = vsel %vm508, %v484, 0.0
    %534 = vadd.xlane.f32.xlu0 %v533
    %v535 = vpop.xlane.xlu0 %534
    %v536 = vsel %vm508, %v485, 0.0
    %537 = vadd.xlane.f32.xlu0 %v536
    %v538 = vpop.xlane.xlu0 %537
    %v539 = vsel %vm508, %v486, 0.0
    %540 = vadd.xlane.f32.xlu0 %v539
    %v541 = vpop.xlane.xlu0 %540
    %v542 = vsel %vm508, %v487, 0.0
    %543 = vadd.xlane.f32.xlu0 %v542
    %v544 = vpop.xlane.xlu0 %543
    %v545 = vsel %vm508, %v488, 0.0
    %546 = vadd.xlane.f32.xlu0 %v545
    %v547 = vpop.xlane.xlu0 %546
    %v548 = vsel %vm508, %v489, 0.0
    %549 = vadd.xlane.f32.xlu0 %v548
    %v550 = vpop.xlane.xlu0 %549
    %v551 = vsel %vm508, %v490, 0.0
    %552 = vadd.xlane.f32.xlu0 %v551
    %v553 = vpop.xlane.xlu0 %552
    %v554 = vsel %vm508, %v491, 0.0
    %555 = vadd.xlane.f32.xlu0 %v554
    %v556 = vpop.xlane.xlu0 %555
    %v557 = vsel %vm508, %v492, 0.0
    %558 = vadd.xlane.f32.xlu0 %v557
    %v559 = vpop.xlane.xlu0 %558
    %v560 = vsel %vm508, %v493, 0.0
    %561 = vadd.xlane.f32.xlu0 %v560
    %v562 = vpop.xlane.xlu0 %561
    %v563 = vsel %vm508, %v494, 0.0
    %564 = vadd.xlane.f32.xlu0 %v563
    %v565 = vpop.xlane.xlu0 %564
    %v566 = vsel %vm508, %v495, 0.0
    %567 = vadd.xlane.f32.xlu0 %v566
    %v568 = vpop.xlane.xlu0 %567
    %v569 = vsel %vm508, %v496, 0.0
    %570 = vadd.xlane.f32.xlu0 %v569
    %v571 = vpop.xlane.xlu0 %570
    %v572 = vsel %vm508, %v497, 0.0
    %573 = vadd.xlane.f32.xlu0 %v572
    %v574 = vpop.xlane.xlu0 %573
    %v575 = vsel %vm508, %v498, 0.0
    %576 = vadd.xlane.f32.xlu0 %v575
    %v577 = vpop.xlane.xlu0 %576
    %v578 = vsel %vm508, %v499, 0.0
    %579 = vadd.xlane.f32.xlu0 %v578
    %v580 = vpop.xlane.xlu0 %579
    %v581 = vsel %vm508, %v500, 0.0
    %582 = vadd.xlane.f32.xlu0 %v581
    %v583 = vpop.xlane.xlu0 %582
    %v584 = vsel %vm508, %v501, 0.0
    %585 = vadd.xlane.f32.xlu0 %v584
    %v586 = vpop.xlane.xlu0 %585
    %v587 = vsel %vm508, %v502, 0.0
    %588 = vadd.xlane.f32.xlu0 %v587
    %v589 = vpop.xlane.xlu0 %588
    %v590 = vsel %vm508, %v503, 0.0
    %591 = vadd.xlane.f32.xlu0 %v590
    %v592 = vpop.xlane.xlu0 %591
    %v593 = vsel %vm508, %v504, 0.0
    %594 = vadd.xlane.f32.xlu0 %v593
    %v595 = vpop.xlane.xlu0 %594
    %v596 = vsel %vm508, %v505, 0.0
    %597 = vadd.xlane.f32.xlu0 %v596
    %v598 = vpop.xlane.xlu0 %597
    %v599 = vsel %vm508, %v506, 0.0
    %600 = vadd.xlane.f32.xlu0 %v599
    %v601 = vpop.xlane.xlu0 %600
    %v602 = vsel %vm508, %v507, 0.0
    %603 = vadd.xlane.f32.xlu0 %v602
    %v604 = vpop.xlane.xlu0 %603
    %s605 = sld [smem:[#allocation2]]
    %v606 = vstv %s605
    %v607 = vadd.f32 %v511, %v606
    %v608 = vadd.f32 %v514, %v606
    %v609 = vadd.f32 %v517, %v606
    %v610 = vadd.f32 %v520, %v606
    %v611 = vadd.f32 %v523, %v606
    %v612 = vadd.f32 %v526, %v606
    %v613 = vadd.f32 %v529, %v606
    %v614 = vadd.f32 %v532, %v606
    %v615 = vadd.f32 %v535, %v606
    %v616 = vadd.f32 %v538, %v606
    %v617 = vadd.f32 %v541, %v606
    %v618 = vadd.f32 %v544, %v606
    %v619 = vadd.f32 %v547, %v606
    %v620 = vadd.f32 %v550, %v606
    %v621 = vadd.f32 %v553, %v606
    %v622 = vadd.f32 %v556, %v606
    %v623 = vadd.f32 %v559, %v606
    %v624 = vadd.f32 %v562, %v606
    %v625 = vadd.f32 %v565, %v606
    %v626 = vadd.f32 %v568, %v606
    %v627 = vadd.f32 %v571, %v606
    %v628 = vadd.f32 %v574, %v606
    %v629 = vadd.f32 %v577, %v606
    %v630 = vadd.f32 %v580, %v606
    %v631 = vadd.f32 %v583, %v606
    %v632 = vadd.f32 %v586, %v606
    %v633 = vadd.f32 %v589, %v606
    %v634 = vadd.f32 %v592, %v606
    %v635 = vadd.f32 %v595, %v606
    %v636 = vadd.f32 %v598, %v606
    %v637 = vadd.f32 %v601, %v606
    %v638 = vadd.f32 %v604, %v606
    %v671 = vperm.slane %v607, 0
    %v672 = vperm.slane %v607, 1
    %v673 = vperm.slane %v607, 2
    %v674 = vperm.slane %v607, 3
    %v675 = vperm.slane %v607, 4
    %v676 = vperm.slane %v607, 5
    %v677 = vperm.slane %v607, 6
    %v678 = vperm.slane %v607, 7
    %v679 = vperm.slane %v608, 0
    %v680 = vperm.slane %v608, 1
    %v681 = vperm.slane %v608, 2
    %v682 = vperm.slane %v608, 3
    %v683 = vperm.slane %v608, 4
    %v684 = vperm.slane %v608, 5
    %v685 = vperm.slane %v608, 6
    %v686 = vperm.slane %v608, 7
    %v687 = vperm.slane %v609, 0
    %v688 = vperm.slane %v609, 1
    %v689 = vperm.slane %v609, 2
    %v690 = vperm.slane %v609, 3
    %v691 = vperm.slane %v609, 4
    %v692 = vperm.slane %v609, 5
    %v693 = vperm.slane %v609, 6
    %v694 = vperm.slane %v609, 7
    %v695 = vperm.slane %v610, 0
    %v696 = vperm.slane %v610, 1
    %v697 = vperm.slane %v610, 2
    %v698 = vperm.slane %v610, 3
    %v699 = vperm.slane %v610, 4
    %v700 = vperm.slane %v610, 5
    %v701 = vperm.slane %v610, 6
    %v702 = vperm.slane %v610, 7
    %v703 = vperm.slane %v611, 0
    %v704 = vperm.slane %v611, 1
    %v705 = vperm.slane %v611, 2
    %v706 = vperm.slane %v611, 3
    %v707 = vperm.slane %v611, 4
    %v708 = vperm.slane %v611, 5
    %v709 = vperm.slane %v611, 6
    %v710 = vperm.slane %v611, 7
    %v711 = vperm.slane %v612, 0
    %v712 = vperm.slane %v612, 1
    %v713 = vperm.slane %v612, 2
    %v714 = vperm.slane %v612, 3
    %v715 = vperm.slane %v612, 4
    %v716 = vperm.slane %v612, 5
    %v717 = vperm.slane %v612, 6
    %v718 = vperm.slane %v612, 7
    %v719 = vperm.slane %v613, 0
    %v720 = vperm.slane %v613, 1
    %v721 = vperm.slane %v613, 2
    %v722 = vperm.slane %v613, 3
    %v723 = vperm.slane %v613, 4
    %v724 = vperm.slane %v613, 5
    %v725 = vperm.slane %v613, 6
    %v726 = vperm.slane %v613, 7
    %v727 = vperm.slane %v614, 0
    %v728 = vperm.slane %v614, 1
    %v729 = vperm.slane %v614, 2
    %v730 = vperm.slane %v614, 3
    %v731 = vperm.slane %v614, 4
    %v732 = vperm.slane %v614, 5
    %v733 = vperm.slane %v614, 6
    %v734 = vperm.slane %v614, 7
    %v735 = vperm.slane %v615, 0
    %v736 = vperm.slane %v615, 1
    %v737 = vperm.slane %v615, 2
    %v738 = vperm.slane %v615, 3
    %v739 = vperm.slane %v615, 4
    %v740 = vperm.slane %v615, 5
    %v741 = vperm.slane %v615, 6
    %v742 = vperm.slane %v615, 7
    %v743 = vperm.slane %v616, 0
    %v744 = vperm.slane %v616, 1
    %v745 = vperm.slane %v616, 2
    %v746 = vperm.slane %v616, 3
    %v747 = vperm.slane %v616, 4
    %v748 = vperm.slane %v616, 5
    %v749 = vperm.slane %v616, 6
    %v750 = vperm.slane %v616, 7
    %v751 = vperm.slane %v617, 0
    %v752 = vperm.slane %v617, 1
    %v753 = vperm.slane %v617, 2
    %v754 = vperm.slane %v617, 3
    %v755 = vperm.slane %v617, 4
    %v756 = vperm.slane %v617, 5
    %v757 = vperm.slane %v617, 6
    %v758 = vperm.slane %v617, 7
    %v759 = vperm.slane %v618, 0
    %v760 = vperm.slane %v618, 1
    %v761 = vperm.slane %v618, 2
    %v762 = vperm.slane %v618, 3
    %v763 = vperm.slane %v618, 4
    %v764 = vperm.slane %v618, 5
    %v765 = vperm.slane %v618, 6
    %v766 = vperm.slane %v618, 7
    %v767 = vperm.slane %v619, 0
    %v768 = vperm.slane %v619, 1
    %v769 = vperm.slane %v619, 2
    %v770 = vperm.slane %v619, 3
    %v771 = vperm.slane %v619, 4
    %v772 = vperm.slane %v619, 5
    %v773 = vperm.slane %v619, 6
    %v774 = vperm.slane %v619, 7
    %v775 = vperm.slane %v620, 0
    %v776 = vperm.slane %v620, 1
    %v777 = vperm.slane %v620, 2
    %v778 = vperm.slane %v620, 3
    %v779 = vperm.slane %v620, 4
    %v780 = vperm.slane %v620, 5
    %v781 = vperm.slane %v620, 6
    %v782 = vperm.slane %v620, 7
    %v783 = vperm.slane %v621, 0
    %v784 = vperm.slane %v621, 1
    %v785 = vperm.slane %v621, 2
    %v786 = vperm.slane %v621, 3
    %v787 = vperm.slane %v621, 4
    %v788 = vperm.slane %v621, 5
    %v789 = vperm.slane %v621, 6
    %v790 = vperm.slane %v621, 7
    %v791 = vperm.slane %v622, 0
    %v792 = vperm.slane %v622, 1
    %v793 = vperm.slane %v622, 2
    %v794 = vperm.slane %v622, 3
    %v795 = vperm.slane %v622, 4
    %v796 = vperm.slane %v622, 5
    %v797 = vperm.slane %v622, 6
    %v798 = vperm.slane %v622, 7
    %v799 = vperm.slane %v623, 0
    %v800 = vperm.slane %v623, 1
    %v801 = vperm.slane %v623, 2
    %v802 = vperm.slane %v623, 3
    %v803 = vperm.slane %v623, 4
    %v804 = vperm.slane %v623, 5
    %v805 = vperm.slane %v623, 6
    %v806 = vperm.slane %v623, 7
    %v807 = vperm.slane %v624, 0
    %v808 = vperm.slane %v624, 1
    %v809 = vperm.slane %v624, 2
    %v810 = vperm.slane %v624, 3
    %v811 = vperm.slane %v624, 4
    %v812 = vperm.slane %v624, 5
    %v813 = vperm.slane %v624, 6
    %v814 = vperm.slane %v624, 7
    %v815 = vperm.slane %v625, 0
    %v816 = vperm.slane %v625, 1
    %v817 = vperm.slane %v625, 2
    %v818 = vperm.slane %v625, 3
    %v819 = vperm.slane %v625, 4
    %v820 = vperm.slane %v625, 5
    %v821 = vperm.slane %v625, 6
    %v822 = vperm.slane %v625, 7
    %v823 = vperm.slane %v626, 0
    %v824 = vperm.slane %v626, 1
    %v825 = vperm.slane %v626, 2
    %v826 = vperm.slane %v626, 3
    %v827 = vperm.slane %v626, 4
    %v828 = vperm.slane %v626, 5
    %v829 = vperm.slane %v626, 6
    %v830 = vperm.slane %v626, 7
    %v831 = vperm.slane %v627, 0
    %v832 = vperm.slane %v627, 1
    %v833 = vperm.slane %v627, 2
    %v834 = vperm.slane %v627, 3
    %v835 = vperm.slane %v627, 4
    %v836 = vperm.slane %v627, 5
    %v837 = vperm.slane %v627, 6
    %v838 = vperm.slane %v627, 7
    %v839 = vperm.slane %v628, 0
    %v840 = vperm.slane %v628, 1
    %v841 = vperm.slane %v628, 2
    %v842 = vperm.slane %v628, 3
    %v843 = vperm.slane %v628, 4
    %v844 = vperm.slane %v628, 5
    %v845 = vperm.slane %v628, 6
    %v846 = vperm.slane %v628, 7
    %v847 = vperm.slane %v629, 0
    %v848 = vperm.slane %v629, 1
    %v849 = vperm.slane %v629, 2
    %v850 = vperm.slane %v629, 3
    %v851 = vperm.slane %v629, 4
    %v852 = vperm.slane %v629, 5
    %v853 = vperm.slane %v629, 6
    %v854 = vperm.slane %v629, 7
    %v855 = vperm.slane %v630, 0
    %v856 = vperm.slane %v630, 1
    %v857 = vperm.slane %v630, 2
    %v858 = vperm.slane %v630, 3
    %v859 = vperm.slane %v630, 4
    %v860 = vperm.slane %v630, 5
    %v861 = vperm.slane %v630, 6
    %v862 = vperm.slane %v630, 7
    %v863 = vperm.slane %v631, 0
    %v864 = vperm.slane %v631, 1
    %v865 = vperm.slane %v631, 2
    %v866 = vperm.slane %v631, 3
    %v867 = vperm.slane %v631, 4
    %v868 = vperm.slane %v631, 5
    %v869 = vperm.slane %v631, 6
    %v870 = vperm.slane %v631, 7
    %v871 = vperm.slane %v632, 0
    %v872 = vperm.slane %v632, 1
    %v873 = vperm.slane %v632, 2
    %v874 = vperm.slane %v632, 3
    %v875 = vperm.slane %v632, 4
    %v876 = vperm.slane %v632, 5
    %v877 = vperm.slane %v632, 6
    %v878 = vperm.slane %v632, 7
    %v879 = vperm.slane %v633, 0
    %v880 = vperm.slane %v633, 1
    %v881 = vperm.slane %v633, 2
    %v882 = vperm.slane %v633, 3
    %v883 = vperm.slane %v633, 4
    %v884 = vperm.slane %v633, 5
    %v885 = vperm.slane %v633, 6
    %v886 = vperm.slane %v633, 7
    %v887 = vperm.slane %v634, 0
    %v888 = vperm.slane %v634, 1
    %v889 = vperm.slane %v634, 2
    %v890 = vperm.slane %v634, 3
    %v891 = vperm.slane %v634, 4
    %v892 = vperm.slane %v634, 5
    %v893 = vperm.slane %v634, 6
    %v894 = vperm.slane %v634, 7
    %v895 = vperm.slane %v635, 0
    %v896 = vperm.slane %v635, 1
    %v897 = vperm.slane %v635, 2
    %v898 = vperm.slane %v635, 3
    %v899 = vperm.slane %v635, 4
    %v900 = vperm.slane %v635, 5
    %v901 = vperm.slane %v635, 6
    %v902 = vperm.slane %v635, 7
    %v903 = vperm.slane %v636, 0
    %v904 = vperm.slane %v636, 1
    %v905 = vperm.slane %v636, 2
    %v906 = vperm.slane %v636, 3
    %v907 = vperm.slane %v636, 4
    %v908 = vperm.slane %v636, 5
    %v909 = vperm.slane %v636, 6
    %v910 = vperm.slane %v636, 7
    %v911 = vperm.slane %v637, 0
    %v912 = vperm.slane %v637, 1
    %v913 = vperm.slane %v637, 2
    %v914 = vperm.slane %v637, 3
    %v915 = vperm.slane %v637, 4
    %v916 = vperm.slane %v637, 5
    %v917 = vperm.slane %v637, 6
    %v918 = vperm.slane %v637, 7
    %v919 = vperm.slane %v638, 0
    %v920 = vperm.slane %v638, 1
    %v921 = vperm.slane %v638, 2
    %v922 = vperm.slane %v638, 3
    %v923 = vperm.slane %v638, 4
    %v924 = vperm.slane %v638, 5
    %v925 = vperm.slane %v638, 6
    %v926 = vperm.slane %v638, 7
    %927 = vst [vmem:[#allocation1] ss:$9 sm:$0xff] %v671
    %s928 = scalar_lea.vmem [#allocation1], 1
    %929 = vst [vmem:[%s928] ss:$9 sm:$0xff] %v672
    %s930 = scalar_lea.vmem [#allocation1], 2
    %931 = vst [vmem:[%s930] ss:$9 sm:$0xff] %v673
    %s932 = scalar_lea.vmem [#allocation1], 3
    %933 = vst [vmem:[%s932] ss:$9 sm:$0xff] %v674
    %s934 = scalar_lea.vmem [#allocation1], 4
    %935 = vst [vmem:[%s934] ss:$9 sm:$0xff] %v675
    %s936 = scalar_lea.vmem [#allocation1], 5
    %937 = vst [vmem:[%s936] ss:$9 sm:$0xff] %v676
    %s938 = scalar_lea.vmem [#allocation1], 6
    %939 = vst [vmem:[%s938] ss:$9 sm:$0xff] %v677
    %s940 = scalar_lea.vmem [#allocation1], 7
    %941 = vst [vmem:[%s940] ss:$9 sm:$0xff] %v678
    %v942 = vld [vmem:[#allocation1] sm:$0xff]
    %943 = vst [vmem:[#allocation1] ss:$9 sm:$0xff] %v679
    %944 = vst [vmem:[%s928] ss:$9 sm:$0xff] %v680
    %945 = vst [vmem:[%s930] ss:$9 sm:$0xff] %v681
    %946 = vst [vmem:[%s932] ss:$9 sm:$0xff] %v682
    %947 = vst [vmem:[%s934] ss:$9 sm:$0xff] %v683
    %948 = vst [vmem:[%s936] ss:$9 sm:$0xff] %v684
    %949 = vst [vmem:[%s938] ss:$9 sm:$0xff] %v685
    %950 = vst [vmem:[%s940] ss:$9 sm:$0xff] %v686
    %v951 = vld [vmem:[#allocation1] sm:$0xff]
    %952 = vst [vmem:[#allocation1] ss:$9 sm:$0xff] %v687
    %953 = vst [vmem:[%s928] ss:$9 sm:$0xff] %v688
    %954 = vst [vmem:[%s930] ss:$9 sm:$0xff] %v689
    %955 = vst [vmem:[%s932] ss:$9 sm:$0xff] %v690
    %956 = vst [vmem:[%s934] ss:$9 sm:$0xff] %v691
    %957 = vst [vmem:[%s936] ss:$9 sm:$0xff] %v692
    %958 = vst [vmem:[%s938] ss:$9 sm:$0xff] %v693
    %959 = vst [vmem:[%s940] ss:$9 sm:$0xff] %v694
    %v960 = vld [vmem:[#allocation1] sm:$0xff]
    %961 = vst [vmem:[#allocation1] ss:$9 sm:$0xff] %v695
    %962 = vst [vmem:[%s928] ss:$9 sm:$0xff] %v696
    %963 = vst [vmem:[%s930] ss:$9 sm:$0xff] %v697
    %964 = vst [vmem:[%s932] ss:$9 sm:$0xff] %v698
    %965 = vst [vmem:[%s934] ss:$9 sm:$0xff] %v699
    %966 = vst [vmem:[%s936] ss:$9 sm:$0xff] %v700
    %967 = vst [vmem:[%s938] ss:$9 sm:$0xff] %v701
    %968 = vst [vmem:[%s940] ss:$9 sm:$0xff] %v702
    %v969 = vld [vmem:[#allocation1] sm:$0xff]
    %970 = vst [vmem:[#allocation1] ss:$9 sm:$0xff] %v703
    %971 = vst [vmem:[%s928] ss:$9 sm:$0xff] %v704
    %972 = vst [vmem:[%s930] ss:$9 sm:$0xff] %v705
    %973 = vst [vmem:[%s932] ss:$9 sm:$0xff] %v706
    %974 = vst [vmem:[%s934] ss:$9 sm:$0xff] %v707
    %975 = vst [vmem:[%s936] ss:$9 sm:$0xff] %v708
    %976 = vst [vmem:[%s938] ss:$9 sm:$0xff] %v709
    %977 = vst [vmem:[%s940] ss:$9 sm:$0xff] %v710
    %v978 = vld [vmem:[#allocation1] sm:$0xff]
    %979 = vst [vmem:[#allocation1] ss:$9 sm:$0xff] %v711
    %980 = vst [vmem:[%s928] ss:$9 sm:$0xff] %v712
    %981 = vst [vmem:[%s930] ss:$9 sm:$0xff] %v713
    %982 = vst [vmem:[%s932] ss:$9 sm:$0xff] %v714
    %983 = vst [vmem:[%s934] ss:$9 sm:$0xff] %v715
    %984 = vst [vmem:[%s936] ss:$9 sm:$0xff] %v716
    %985 = vst [vmem:[%s938] ss:$9 sm:$0xff] %v717
    %986 = vst [vmem:[%s940] ss:$9 sm:$0xff] %v718
    %v987 = vld [vmem:[#allocation1] sm:$0xff]
    %988 = vst [vmem:[#allocation1] ss:$9 sm:$0xff] %v719
    %989 = vst [vmem:[%s928] ss:$9 sm:$0xff] %v720
    %990 = vst [vmem:[%s930] ss:$9 sm:$0xff] %v721
    %991 = vst [vmem:[%s932] ss:$9 sm:$0xff] %v722
    %992 = vst [vmem:[%s934] ss:$9 sm:$0xff] %v723
    %993 = vst [vmem:[%s936] ss:$9 sm:$0xff] %v724
    %994 = vst [vmem:[%s938] ss:$9 sm:$0xff] %v725
    %995 = vst [vmem:[%s940] ss:$9 sm:$0xff] %v726
    %v996 = vld [vmem:[#allocation1] sm:$0xff]
    %997 = vst [vmem:[#allocation1] ss:$9 sm:$0xff] %v727
    %998 = vst [vmem:[%s928] ss:$9 sm:$0xff] %v728
    %999 = vst [vmem:[%s930] ss:$9 sm:$0xff] %v729
    %1000 = vst [vmem:[%s932] ss:$9 sm:$0xff] %v730
    %1001 = vst [vmem:[%s934] ss:$9 sm:$0xff] %v731
    %1002 = vst [vmem:[%s936] ss:$9 sm:$0xff] %v732
    %1003 = vst [vmem:[%s938] ss:$9 sm:$0xff] %v733
    %1004 = vst [vmem:[%s940] ss:$9 sm:$0xff] %v734
    %v1005 = vld [vmem:[#allocation1] sm:$0xff]
    %1006 = vst [vmem:[#allocation1] ss:$9 sm:$0xff] %v735
    %1007 = vst [vmem:[%s928] ss:$9 sm:$0xff] %v736
    %1008 = vst [vmem:[%s930] ss:$9 sm:$0xff] %v737
    %1009 = vst [vmem:[%s932] ss:$9 sm:$0xff] %v738
    %1010 = vst [vmem:[%s934] ss:$9 sm:$0xff] %v739
    %1011 = vst [vmem:[%s936] ss:$9 sm:$0xff] %v740
    %1012 = vst [vmem:[%s938] ss:$9 sm:$0xff] %v741
    %1013 = vst [vmem:[%s940] ss:$9 sm:$0xff] %v742
    %v1014 = vld [vmem:[#allocation1] sm:$0xff]
    %1015 = vst [vmem:[#allocation1] ss:$9 sm:$0xff] %v743
    %1016 = vst [vmem:[%s928] ss:$9 sm:$0xff] %v744
    %1017 = vst [vmem:[%s930] ss:$9 sm:$0xff] %v745
    %1018 = vst [vmem:[%s932] ss:$9 sm:$0xff] %v746
    %1019 = vst [vmem:[%s934] ss:$9 sm:$0xff] %v747
    %1020 = vst [vmem:[%s936] ss:$9 sm:$0xff] %v748
    %1021 = vst [vmem:[%s938] ss:$9 sm:$0xff] %v749
    %1022 = vst [vmem:[%s940] ss:$9 sm:$0xff] %v750
    %v1023 = vld [vmem:[#allocation1] sm:$0xff]
    %1024 = vst [vmem:[#allocation1] ss:$9 sm:$0xff] %v751
    %1025 = vst [vmem:[%s928] ss:$9 sm:$0xff] %v752
    %1026 = vst [vmem:[%s930] ss:$9 sm:$0xff] %v753
    %1027 = vst [vmem:[%s932] ss:$9 sm:$0xff] %v754
    %1028 = vst [vmem:[%s934] ss:$9 sm:$0xff] %v755
    %1029 = vst [vmem:[%s936] ss:$9 sm:$0xff] %v756
    %1030 = vst [vmem:[%s938] ss:$9 sm:$0xff] %v757
    %1031 = vst [vmem:[%s940] ss:$9 sm:$0xff] %v758
    %v1032 = vld [vmem:[#allocation1] sm:$0xff]
    %1033 = vst [vmem:[#allocation1] ss:$9 sm:$0xff] %v759
    %1034 = vst [vmem:[%s928] ss:$9 sm:$0xff] %v760
    %1035 = vst [vmem:[%s930] ss:$9 sm:$0xff] %v761
    %1036 = vst [vmem:[%s932] ss:$9 sm:$0xff] %v762
    %1037 = vst [vmem:[%s934] ss:$9 sm:$0xff] %v763
    %1038 = vst [vmem:[%s936] ss:$9 sm:$0xff] %v764
    %1039 = vst [vmem:[%s938] ss:$9 sm:$0xff] %v765
    %1040 = vst [vmem:[%s940] ss:$9 sm:$0xff] %v766
    %v1041 = vld [vmem:[#allocation1] sm:$0xff]
    %1042 = vst [vmem:[#allocation1] ss:$9 sm:$0xff] %v767
    %1043 = vst [vmem:[%s928] ss:$9 sm:$0xff] %v768
    %1044 = vst [vmem:[%s930] ss:$9 sm:$0xff] %v769
    %1045 = vst [vmem:[%s932] ss:$9 sm:$0xff] %v770
    %1046 = vst [vmem:[%s934] ss:$9 sm:$0xff] %v771
    %1047 = vst [vmem:[%s936] ss:$9 sm:$0xff] %v772
    %1048 = vst [vmem:[%s938] ss:$9 sm:$0xff] %v773
    %1049 = vst [vmem:[%s940] ss:$9 sm:$0xff] %v774
    %v1050 = vld [vmem:[#allocation1] sm:$0xff]
    %1051 = vst [vmem:[#allocation1] ss:$9 sm:$0xff] %v775
    %1052 = vst [vmem:[%s928] ss:$9 sm:$0xff] %v776
    %1053 = vst [vmem:[%s930] ss:$9 sm:$0xff] %v777
    %1054 = vst [vmem:[%s932] ss:$9 sm:$0xff] %v778
    %1055 = vst [vmem:[%s934] ss:$9 sm:$0xff] %v779
    %1056 = vst [vmem:[%s936] ss:$9 sm:$0xff] %v780
    %1057 = vst [vmem:[%s938] ss:$9 sm:$0xff] %v781
    %1058 = vst [vmem:[%s940] ss:$9 sm:$0xff] %v782
    %v1059 = vld [vmem:[#allocation1] sm:$0xff]
    %1060 = vst [vmem:[#allocation1] ss:$9 sm:$0xff] %v783
    %1061 = vst [vmem:[%s928] ss:$9 sm:$0xff] %v784
    %1062 = vst [vmem:[%s930] ss:$9 sm:$0xff] %v785
    %1063 = vst [vmem:[%s932] ss:$9 sm:$0xff] %v786
    %1064 = vst [vmem:[%s934] ss:$9 sm:$0xff] %v787
    %1065 = vst [vmem:[%s936] ss:$9 sm:$0xff] %v788
    %1066 = vst [vmem:[%s938] ss:$9 sm:$0xff] %v789
    %1067 = vst [vmem:[%s940] ss:$9 sm:$0xff] %v790
    %v1068 = vld [vmem:[#allocation1] sm:$0xff]
    %1069 = vst [vmem:[#allocation1] ss:$9 sm:$0xff] %v791
    %1070 = vst [vmem:[%s928] ss:$9 sm:$0xff] %v792
    %1071 = vst [vmem:[%s930] ss:$9 sm:$0xff] %v793
    %1072 = vst [vmem:[%s932] ss:$9 sm:$0xff] %v794
    %1073 = vst [vmem:[%s934] ss:$9 sm:$0xff] %v795
    %1074 = vst [vmem:[%s936] ss:$9 sm:$0xff] %v796
    %1075 = vst [vmem:[%s938] ss:$9 sm:$0xff] %v797
    %1076 = vst [vmem:[%s940] ss:$9 sm:$0xff] %v798
    %v1077 = vld [vmem:[#allocation1] sm:$0xff]
    %1078 = vst [vmem:[#allocation1] ss:$9 sm:$0xff] %v799
    %1079 = vst [vmem:[%s928] ss:$9 sm:$0xff] %v800
    %1080 = vst [vmem:[%s930] ss:$9 sm:$0xff] %v801
    %1081 = vst [vmem:[%s932] ss:$9 sm:$0xff] %v802
    %1082 = vst [vmem:[%s934] ss:$9 sm:$0xff] %v803
    %1083 = vst [vmem:[%s936] ss:$9 sm:$0xff] %v804
    %1084 = vst [vmem:[%s938] ss:$9 sm:$0xff] %v805
    %1085 = vst [vmem:[%s940] ss:$9 sm:$0xff] %v806
    %v1086 = vld [vmem:[#allocation1] sm:$0xff]
    %1087 = vst [vmem:[#allocation1] ss:$9 sm:$0xff] %v807
    %1088 = vst [vmem:[%s928] ss:$9 sm:$0xff] %v808
    %1089 = vst [vmem:[%s930] ss:$9 sm:$0xff] %v809
    %1090 = vst [vmem:[%s932] ss:$9 sm:$0xff] %v810
    %1091 = vst [vmem:[%s934] ss:$9 sm:$0xff] %v811
    %1092 = vst [vmem:[%s936] ss:$9 sm:$0xff] %v812
    %1093 = vst [vmem:[%s938] ss:$9 sm:$0xff] %v813
    %1094 = vst [vmem:[%s940] ss:$9 sm:$0xff] %v814
    %v1095 = vld [vmem:[#allocation1] sm:$0xff]
    %1096 = vst [vmem:[#allocation1] ss:$9 sm:$0xff] %v815
    %1097 = vst [vmem:[%s928] ss:$9 sm:$0xff] %v816
    %1098 = vst [vmem:[%s930] ss:$9 sm:$0xff] %v817
    %1099 = vst [vmem:[%s932] ss:$9 sm:$0xff] %v818
    %1100 = vst [vmem:[%s934] ss:$9 sm:$0xff] %v819
    %1101 = vst [vmem:[%s936] ss:$9 sm:$0xff] %v820
    %1102 = vst [vmem:[%s938] ss:$9 sm:$0xff] %v821
    %1103 = vst [vmem:[%s940] ss:$9 sm:$0xff] %v822
    %v1104 = vld [vmem:[#allocation1] sm:$0xff]
    %1105 = vst [vmem:[#allocation1] ss:$9 sm:$0xff] %v823
    %1106 = vst [vmem:[%s928] ss:$9 sm:$0xff] %v824
    %1107 = vst [vmem:[%s930] ss:$9 sm:$0xff] %v825
    %1108 = vst [vmem:[%s932] ss:$9 sm:$0xff] %v826
    %1109 = vst [vmem:[%s934] ss:$9 sm:$0xff] %v827
    %1110 = vst [vmem:[%s936] ss:$9 sm:$0xff] %v828
    %1111 = vst [vmem:[%s938] ss:$9 sm:$0xff] %v829
    %1112 = vst [vmem:[%s940] ss:$9 sm:$0xff] %v830
    %v1113 = vld [vmem:[#allocation1] sm:$0xff]
    %1114 = vst [vmem:[#allocation1] ss:$9 sm:$0xff] %v831
    %1115 = vst [vmem:[%s928] ss:$9 sm:$0xff] %v832
    %1116 = vst [vmem:[%s930] ss:$9 sm:$0xff] %v833
    %1117 = vst [vmem:[%s932] ss:$9 sm:$0xff] %v834
    %1118 = vst [vmem:[%s934] ss:$9 sm:$0xff] %v835
    %1119 = vst [vmem:[%s936] ss:$9 sm:$0xff] %v836
    %1120 = vst [vmem:[%s938] ss:$9 sm:$0xff] %v837
    %1121 = vst [vmem:[%s940] ss:$9 sm:$0xff] %v838
    %v1122 = vld [vmem:[#allocation1] sm:$0xff]
    %1123 = vst [vmem:[#allocation1] ss:$9 sm:$0xff] %v839
    %1124 = vst [vmem:[%s928] ss:$9 sm:$0xff] %v840
    %1125 = vst [vmem:[%s930] ss:$9 sm:$0xff] %v841
    %1126 = vst [vmem:[%s932] ss:$9 sm:$0xff] %v842
    %1127 = vst [vmem:[%s934] ss:$9 sm:$0xff] %v843
    %1128 = vst [vmem:[%s936] ss:$9 sm:$0xff] %v844
    %1129 = vst [vmem:[%s938] ss:$9 sm:$0xff] %v845
    %1130 = vst [vmem:[%s940] ss:$9 sm:$0xff] %v846
    %v1131 = vld [vmem:[#allocation1] sm:$0xff]
    %1132 = vst [vmem:[#allocation1] ss:$9 sm:$0xff] %v847
    %1133 = vst [vmem:[%s928] ss:$9 sm:$0xff] %v848
    %1134 = vst [vmem:[%s930] ss:$9 sm:$0xff] %v849
    %1135 = vst [vmem:[%s932] ss:$9 sm:$0xff] %v850
    %1136 = vst [vmem:[%s934] ss:$9 sm:$0xff] %v851
    %1137 = vst [vmem:[%s936] ss:$9 sm:$0xff] %v852
    %1138 = vst [vmem:[%s938] ss:$9 sm:$0xff] %v853
    %1139 = vst [vmem:[%s940] ss:$9 sm:$0xff] %v854
    %v1140 = vld [vmem:[#allocation1] sm:$0xff]
    %1141 = vst [vmem:[#allocation1] ss:$9 sm:$0xff] %v855
    %1142 = vst [vmem:[%s928] ss:$9 sm:$0xff] %v856
    %1143 = vst [vmem:[%s930] ss:$9 sm:$0xff] %v857
    %1144 = vst [vmem:[%s932] ss:$9 sm:$0xff] %v858
    %1145 = vst [vmem:[%s934] ss:$9 sm:$0xff] %v859
    %1146 = vst [vmem:[%s936] ss:$9 sm:$0xff] %v860
    %1147 = vst [vmem:[%s938] ss:$9 sm:$0xff] %v861
    %1148 = vst [vmem:[%s940] ss:$9 sm:$0xff] %v862
    %v1149 = vld [vmem:[#allocation1] sm:$0xff]
    %1150 = vst [vmem:[#allocation1] ss:$9 sm:$0xff] %v863
    %1151 = vst [vmem:[%s928] ss:$9 sm:$0xff] %v864
    %1152 = vst [vmem:[%s930] ss:$9 sm:$0xff] %v865
    %1153 = vst [vmem:[%s932] ss:$9 sm:$0xff] %v866
    %1154 = vst [vmem:[%s934] ss:$9 sm:$0xff] %v867
    %1155 = vst [vmem:[%s936] ss:$9 sm:$0xff] %v868
    %1156 = vst [vmem:[%s938] ss:$9 sm:$0xff] %v869
    %1157 = vst [vmem:[%s940] ss:$9 sm:$0xff] %v870
    %v1158 = vld [vmem:[#allocation1] sm:$0xff]
    %1159 = vst [vmem:[#allocation1] ss:$9 sm:$0xff] %v871
    %1160 = vst [vmem:[%s928] ss:$9 sm:$0xff] %v872
    %1161 = vst [vmem:[%s930] ss:$9 sm:$0xff] %v873
    %1162 = vst [vmem:[%s932] ss:$9 sm:$0xff] %v874
    %1163 = vst [vmem:[%s934] ss:$9 sm:$0xff] %v875
    %1164 = vst [vmem:[%s936] ss:$9 sm:$0xff] %v876
    %1165 = vst [vmem:[%s938] ss:$9 sm:$0xff] %v877
    %1166 = vst [vmem:[%s940] ss:$9 sm:$0xff] %v878
    %v1167 = vld [vmem:[#allocation1] sm:$0xff]
    %1168 = vst [vmem:[#allocation1] ss:$9 sm:$0xff] %v879
    %1169 = vst [vmem:[%s928] ss:$9 sm:$0xff] %v880
    %1170 = vst [vmem:[%s930] ss:$9 sm:$0xff] %v881
    %1171 = vst [vmem:[%s932] ss:$9 sm:$0xff] %v882
    %1172 = vst [vmem:[%s934] ss:$9 sm:$0xff] %v883
    %1173 = vst [vmem:[%s936] ss:$9 sm:$0xff] %v884
    %1174 = vst [vmem:[%s938] ss:$9 sm:$0xff] %v885
    %1175 = vst [vmem:[%s940] ss:$9 sm:$0xff] %v886
    %v1176 = vld [vmem:[#allocation1] sm:$0xff]
    %1177 = vst [vmem:[#allocation1] ss:$9 sm:$0xff] %v887
    %1178 = vst [vmem:[%s928] ss:$9 sm:$0xff] %v888
    %1179 = vst [vmem:[%s930] ss:$9 sm:$0xff] %v889
    %1180 = vst [vmem:[%s932] ss:$9 sm:$0xff] %v890
    %1181 = vst [vmem:[%s934] ss:$9 sm:$0xff] %v891
    %1182 = vst [vmem:[%s936] ss:$9 sm:$0xff] %v892
    %1183 = vst [vmem:[%s938] ss:$9 sm:$0xff] %v893
    %1184 = vst [vmem:[%s940] ss:$9 sm:$0xff] %v894
    %v1185 = vld [vmem:[#allocation1] sm:$0xff]
    %1186 = vst [vmem:[#allocation1] ss:$9 sm:$0xff] %v895
    %1187 = vst [vmem:[%s928] ss:$9 sm:$0xff] %v896
    %1188 = vst [vmem:[%s930] ss:$9 sm:$0xff] %v897
    %1189 = vst [vmem:[%s932] ss:$9 sm:$0xff] %v898
    %1190 = vst [vmem:[%s934] ss:$9 sm:$0xff] %v899
    %1191 = vst [vmem:[%s936] ss:$9 sm:$0xff] %v900
    %1192 = vst [vmem:[%s938] ss:$9 sm:$0xff] %v901
    %1193 = vst [vmem:[%s940] ss:$9 sm:$0xff] %v902
    %v1194 = vld [vmem:[#allocation1] sm:$0xff]
    %1195 = vst [vmem:[#allocation1] ss:$9 sm:$0xff] %v903
    %1196 = vst [vmem:[%s928] ss:$9 sm:$0xff] %v904
    %1197 = vst [vmem:[%s930] ss:$9 sm:$0xff] %v905
    %1198 = vst [vmem:[%s932] ss:$9 sm:$0xff] %v906
    %1199 = vst [vmem:[%s934] ss:$9 sm:$0xff] %v907
    %1200 = vst [vmem:[%s936] ss:$9 sm:$0xff] %v908
    %1201 = vst [vmem:[%s938] ss:$9 sm:$0xff] %v909
    %1202 = vst [vmem:[%s940] ss:$9 sm:$0xff] %v910
    %v1203 = vld [vmem:[#allocation1] sm:$0xff]
    %1204 = vst [vmem:[#allocation1] ss:$9 sm:$0xff] %v911
    %1205 = vst [vmem:[%s928] ss:$9 sm:$0xff] %v912
    %1206 = vst [vmem:[%s930] ss:$9 sm:$0xff] %v913
    %1207 = vst [vmem:[%s932] ss:$9 sm:$0xff] %v914
    %1208 = vst [vmem:[%s934] ss:$9 sm:$0xff] %v915
    %1209 = vst [vmem:[%s936] ss:$9 sm:$0xff] %v916
    %1210 = vst [vmem:[%s938] ss:$9 sm:$0xff] %v917
    %1211 = vst [vmem:[%s940] ss:$9 sm:$0xff] %v918
    %v1212 = vld [vmem:[#allocation1] sm:$0xff]
    %1213 = vst [vmem:[#allocation1] ss:$9 sm:$0xff] %v919
    %1214 = vst [vmem:[%s928] ss:$9 sm:$0xff] %v920
    %1215 = vst [vmem:[%s930] ss:$9 sm:$0xff] %v921
    %1216 = vst [vmem:[%s932] ss:$9 sm:$0xff] %v922
    %1217 = vst [vmem:[%s934] ss:$9 sm:$0xff] %v923
    %1218 = vst [vmem:[%s936] ss:$9 sm:$0xff] %v924
    %1219 = vst [vmem:[%s938] ss:$9 sm:$0xff] %v925
    %1220 = vst [vmem:[%s940] ss:$9 sm:$0xff] %v926
    %v1221 = vld [vmem:[#allocation1] sm:$0xff]
    %1222 = vset.pattern.permute.xlu0 0
    %1223 = vperm.xlu0 %1222, %v942
    %v1224 = vpop.permute.xlu0 %1223
    %1225 = vset.pattern.permute.xlu0 0
    %1226 = vperm.xlu0 %1225, %v951
    %v1227 = vpop.permute.xlu0 %1226
    %1228 = vset.pattern.permute.xlu0 0
    %1229 = vperm.xlu0 %1228, %v960
    %v1230 = vpop.permute.xlu0 %1229
    %1231 = vset.pattern.permute.xlu0 0
    %1232 = vperm.xlu0 %1231, %v969
    %v1233 = vpop.permute.xlu0 %1232
    %1234 = vset.pattern.permute.xlu0 0
    %1235 = vperm.xlu0 %1234, %v978
    %v1236 = vpop.permute.xlu0 %1235
    %1237 = vset.pattern.permute.xlu0 0
    %1238 = vperm.xlu0 %1237, %v987
    %v1239 = vpop.permute.xlu0 %1238
    %1240 = vset.pattern.permute.xlu0 0
    %1241 = vperm.xlu0 %1240, %v996
    %v1242 = vpop.permute.xlu0 %1241
    %1243 = vset.pattern.permute.xlu0 0
    %1244 = vperm.xlu0 %1243, %v1005
    %v1245 = vpop.permute.xlu0 %1244
    %1246 = vset.pattern.permute.xlu0 0
    %1247 = vperm.xlu0 %1246, %v1014
    %v1248 = vpop.permute.xlu0 %1247
    %1249 = vset.pattern.permute.xlu0 0
    %1250 = vperm.xlu0 %1249, %v1023
    %v1251 = vpop.permute.xlu0 %1250
    %1252 = vset.pattern.permute.xlu0 0
    %1253 = vperm.xlu0 %1252, %v1032
    %v1254 = vpop.permute.xlu0 %1253
    %1255 = vset.pattern.permute.xlu0 0
    %1256 = vperm.xlu0 %1255, %v1041
    %v1257 = vpop.permute.xlu0 %1256
    %1258 = vset.pattern.permute.xlu0 0
    %1259 = vperm.xlu0 %1258, %v1050
    %v1260 = vpop.permute.xlu0 %1259
    %1261 = vset.pattern.permute.xlu0 0
    %1262 = vperm.xlu0 %1261, %v1059
    %v1263 = vpop.permute.xlu0 %1262
    %1264 = vset.pattern.permute.xlu0 0
    %1265 = vperm.xlu0 %1264, %v1068
    %v1266 = vpop.permute.xlu0 %1265
    %1267 = vset.pattern.permute.xlu0 0
    %1268 = vperm.xlu0 %1267, %v1077
    %v1269 = vpop.permute.xlu0 %1268
    %1270 = vset.pattern.permute.xlu0 0
    %1271 = vperm.xlu0 %1270, %v1086
    %v1272 = vpop.permute.xlu0 %1271
    %1273 = vset.pattern.permute.xlu0 0
    %1274 = vperm.xlu0 %1273, %v1095
    %v1275 = vpop.permute.xlu0 %1274
    %1276 = vset.pattern.permute.xlu0 0
    %1277 = vperm.xlu0 %1276, %v1104
    %v1278 = vpop.permute.xlu0 %1277
    %1279 = vset.pattern.permute.xlu0 0
    %1280 = vperm.xlu0 %1279, %v1113
    %v1281 = vpop.permute.xlu0 %1280
    %1282 = vset.pattern.permute.xlu0 0
    %1283 = vperm.xlu0 %1282, %v1122
    %v1284 = vpop.permute.xlu0 %1283
    %1285 = vset.pattern.permute.xlu0 0
    %1286 = vperm.xlu0 %1285, %v1131
    %v1287 = vpop.permute.xlu0 %1286
    %1288 = vset.pattern.permute.xlu0 0
    %1289 = vperm.xlu0 %1288, %v1140
    %v1290 = vpop.permute.xlu0 %1289
    %1291 = vset.pattern.permute.xlu0 0
    %1292 = vperm.xlu0 %1291, %v1149
    %v1293 = vpop.permute.xlu0 %1292
    %1294 = vset.pattern.permute.xlu0 0
    %1295 = vperm.xlu0 %1294, %v1158
    %v1296 = vpop.permute.xlu0 %1295
    %1297 = vset.pattern.permute.xlu0 0
    %1298 = vperm.xlu0 %1297, %v1167
    %v1299 = vpop.permute.xlu0 %1298
    %1300 = vset.pattern.permute.xlu0 0
    %1301 = vperm.xlu0 %1300, %v1176
    %v1302 = vpop.permute.xlu0 %1301
    %1303 = vset.pattern.permute.xlu0 0
    %1304 = vperm.xlu0 %1303, %v1185
    %v1305 = vpop.permute.xlu0 %1304
    %1306 = vset.pattern.permute.xlu0 0
    %1307 = vperm.xlu0 %1306, %v1194
    %v1308 = vpop.permute.xlu0 %1307
    %1309 = vset.pattern.permute.xlu0 0
    %1310 = vperm.xlu0 %1309, %v1203
    %v1311 = vpop.permute.xlu0 %1310
    %1312 = vset.pattern.permute.xlu0 0
    %1313 = vperm.xlu0 %1312, %v1212
    %v1314 = vpop.permute.xlu0 %1313
    %1315 = vset.pattern.permute.xlu0 0
    %1316 = vperm.xlu0 %1315, %v1221
    %v1317 = vpop.permute.xlu0 %1316
    %v1318 = vlaneseq
    %v1319 = vand.u32 %v1318, 127
    %v1320 = vperm.slane %v1224, %v1319
    %v1321 = vadd.s32 %v1319, 4294967288
    %v1322 = vperm.slane %v1227, %v1321
    %vm1323 = vcmask 130112
    %v1324 = vsel %vm1323, %v1322, %v1320
    %v1325 = vadd.s32 %v1319, 4294967280
    %v1326 = vperm.slane %v1230, %v1325
    %vm1327 = vcmask 195712
    %v1328 = vsel %vm1327, %v1326, %v1324
    %v1329 = vadd.s32 %v1319, 4294967272
    %v1330 = vperm.slane %v1233, %v1329
    %vm1331 = vcmask 261312
    %v1332 = vsel %vm1331, %v1330, %v1328
    %v1333 = vadd.s32 %v1319, 4294967264
    %v1334 = vperm.slane %v1236, %v1333
    %vm1335 = vcmask 326912
    %v1336 = vsel %vm1335, %v1334, %v1332
    %v1337 = vadd.s32 %v1319, 4294967256
    %v1338 = vperm.slane %v1239, %v1337
    %vm1339 = vcmask 392512
    %v1340 = vsel %vm1339, %v1338, %v1336
    %v1341 = vadd.s32 %v1319, 4294967248
    %v1342 = vperm.slane %v1242, %v1341
    %vm1343 = vcmask 458112
    %v1344 = vsel %vm1343, %v1342, %v1340
    %v1345 = vadd.s32 %v1319, 4294967240
    %v1346 = vperm.slane %v1245, %v1345
    %vm1347 = vcmask 523712
    %v1348 = vsel %vm1347, %v1346, %v1344
    %v1349 = vadd.s32 %v1319, 4294967232
    %v1350 = vperm.slane %v1248, %v1349
    %vm1351 = vcmask 589312
    %v1352 = vsel %vm1351, %v1350, %v1348
    %v1353 = vadd.s32 %v1319, 4294967224
    %v1354 = vperm.slane %v1251, %v1353
    %vm1355 = vcmask 654912
    %v1356 = vsel %vm1355, %v1354, %v1352
    %v1357 = vadd.s32 %v1319, 4294967216
    %v1358 = vperm.slane %v1254, %v1357
    %vm1359 = vcmask 720512
    %v1360 = vsel %vm1359, %v1358, %v1356
    %v1361 = vadd.s32 %v1319, 4294967208
    %v1362 = vperm.slane %v1257, %v1361
    %vm1363 = vcmask 786112
    %v1364 = vsel %vm1363, %v1362, %v1360
    %v1365 = vadd.s32 %v1319, 4294967200
    %v1366 = vperm.slane %v1260, %v1365
    %vm1367 = vcmask 851712
    %v1368 = vsel %vm1367, %v1366, %v1364
    %v1369 = vadd.s32 %v1319, 4294967192
    %v1370 = vperm.slane %v1263, %v1369
    %vm1371 = vcmask 917312
    %v1372 = vsel %vm1371, %v1370, %v1368
    %v1373 = vadd.s32 %v1319, 4294967184
    %v1374 = vperm.slane %v1266, %v1373
    %vm1375 = vcmask 982912
    %v1376 = vsel %vm1375, %v1374, %v1372
    %v1377 = vadd.s32 %v1319, 4294967176
    %v1378 = vperm.slane %v1269, %v1377
    %vm1379 = vcmask 1048512
    %v1380 = vsel %vm1379, %v1378, %v1376
    %v1381 = vperm.slane %v1272, %v1319
    %v1382 = vperm.slane %v1275, %v1321
    %v1383 = vsel %vm1323, %v1382, %v1381
    %v1384 = vperm.slane %v1278, %v1325
    %v1385 = vsel %vm1327, %v1384, %v1383
    %v1386 = vperm.slane %v1281, %v1329
    %v1387 = vsel %vm1331, %v1386, %v1385
    %v1388 = vperm.slane %v1284, %v1333
    %v1389 = vsel %vm1335, %v1388, %v1387
    %v1390 = vperm.slane %v1287, %v1337
    %v1391 = vsel %vm1339, %v1390, %v1389
    %v1392 = vperm.slane %v1290, %v1341
    %v1393 = vsel %vm1343, %v1392, %v1391
    %v1394 = vperm.slane %v1293, %v1345
    %v1395 = vsel %vm1347, %v1394, %v1393
    %v1396 = vperm.slane %v1296, %v1349
    %v1397 = vsel %vm1351, %v1396, %v1395
    %v1398 = vperm.slane %v1299, %v1353
    %v1399 = vsel %vm1355, %v1398, %v1397
    %v1400 = vperm.slane %v1302, %v1357
    %v1401 = vsel %vm1359, %v1400, %v1399
    %v1402 = vperm.slane %v1305, %v1361
    %v1403 = vsel %vm1363, %v1402, %v1401
    %v1404 = vperm.slane %v1308, %v1365
    %v1405 = vsel %vm1367, %v1404, %v1403
    %v1406 = vperm.slane %v1311, %v1369
    %v1407 = vsel %vm1371, %v1406, %v1405
    %v1408 = vperm.slane %v1314, %v1373
    %v1409 = vsel %vm1375, %v1408, %v1407
    %v1410 = vperm.slane %v1317, %v1377
    %v1411 = vsel %vm1379, %v1410, %v1409
    %v1412 = vrot.slane %v1411, 7
    %vm1413 = vcmask 1040384
    %v1414 = vsel %vm1413, %v1380, %v1412
    %v1416 = vlaneseq
    %vm1417 = vcmp.ge.s32.totalorder %v1416, 0
    %vm1418 = vcmp.lt.s32.totalorder %v1416, 256
    %vm1419 = vmand %vm1417, %vm1418
    %1420 = vst.msk [vmem:[#allocation3] sm:$0x3] %vm1419, %v1414
    // Predicated region
    $region30: #{tpu_custom_call.1} parent=1 // pred_check
      _
    $region31: #{tpu_custom_call.1} parent=1 // pred_check_branch
      %1422 = sbr.rel (0) target = $region33
    $region32: #{tpu_custom_call.1} parent=1 // pred_region
      %1424 = vsyncadd [#allocation4], 0
      %s1426 = sshll.u32 [#allocation3], 4
      %s1427 = int_to_ptr.vmem [resolvable:$true] %s1426
      %s1428 = sshll.u32 %s7, 4
      %s1429 = int_to_ptr.hbm [resolvable:$true] %s1428
      %1431 = dma.vmem_to_hbm [thread:$0]  %s1427, 32, %s1429, [#allocation4]
    $region33: #{tpu_custom_call.1} parent=1 // pred_fallthru
      _
    // Predicated region
    $region34: #{tpu_custom_call.1} parent=1 // pred_check
      _
    $region35: #{tpu_custom_call.1} parent=1 // pred_check_branch
      %1433 = sbr.rel (0) target = $region37
    $region36: #{tpu_custom_call.1} parent=1 // pred_region
      %1435 = dma.done [#allocation4], 32
    $region37: #{tpu_custom_call.1} parent=1 // pred_fallthru
      _
    %1436 = vsyncpa [#allocation4], 1

</llo_original>
